<compile_context>
chip_gen: v7x
topology: tpu7x:2x2x1
jax: 0.10.0
libtpu: 0.0.40
codegen_flags: <defaults>
</compile_context>

<pallas_src>
import jax
import jax.numpy as jnp
from jax.experimental import pallas as pl
from jax.experimental.pallas import tpu as pltpu


def _time_att_kernel(ht_ref, wsel_ref, att_ref):
    # ht_ref: (TB, L*H), wsel_ref: (L*H, L), att_ref: (TB, L) f32
    # Lane-dense load + MXU matmul replaces broadcast-mul + cross-lane reduce.
    s = jnp.dot(ht_ref[...], wsel_ref[...],
                preferred_element_type=jnp.float32)            # (TB, L) f32
    # Numerically-stable softmax over the lag axis (independent per batch row).
    m = jnp.max(s, axis=1, keepdims=True)
    e = jnp.exp(s - m)
    denom = jnp.sum(e, axis=1, keepdims=True)
    # Reciprocal on the (otherwise idle) EUP; approx=False keeps sum-to-1 exact.
    att_ref[...] = (e * pl.reciprocal(denom, approx=False)).astype(att_ref.dtype)


def _choose_block_b(B, row_bytes, itemsize):
    # Keep one double-buffered input tile comfortably inside the scoped-VMEM
    # default on every generation: ~8 MiB per buffer -> <= ~16 MiB with double
    # buffering (plus the tiny Wsel / (TB, L) output buffers).
    budget_bytes = 8 * 1024 * 1024
    tb = min(B, 1024, max(8, budget_bytes // max(row_bytes, 1)))
    if tb >= B:
        return B
    # Sublane alignment: 8 rows for f32 tiles, 16 for 16-bit packed dtypes.
    align = 8 if itemsize >= 4 else 16
    return max(align, (tb // align) * align)


def time_att(ht, W, *, block_b=None):
    """Pallas equivalent of time_att.forward: softmax_L(sum_H(ht * W))."""
    B, L, H = ht.shape
    assert W.shape == (L, H)

    # Fold H into the lane axis: ht -> (B, L*H) is a free contiguous reshape.
    # The per-lag H-reduction becomes a matmul against a block-diagonal
    # selector  Wsel[l*H + h, l] = W[l, h].
    ht2d = ht.reshape(B, L * H)
    eye = jnp.eye(L, dtype=W.dtype)
    wsel = (W[:, :, None] * eye[:, None, :]).reshape(L * H, L).astype(ht.dtype)

    itemsize = jnp.dtype(ht.dtype).itemsize
    row_bytes = L * H * itemsize
    tb = block_b if block_b is not None else _choose_block_b(B, row_bytes, itemsize)
    grid = (pl.cdiv(B, tb),)

    return pl.pallas_call(
        _time_att_kernel,
        out_shape=jax.ShapeDtypeStruct((B, L), jnp.float32),
        grid=grid,
        in_specs=[
            pl.BlockSpec((tb, L * H), lambda i: (i, 0)),
            pl.BlockSpec((L * H, L), lambda i: (0, 0)),
        ],
        out_specs=pl.BlockSpec((tb, L), lambda i: (i, 0)),
        compiler_params=pltpu.CompilerParams(
            dimension_semantics=("parallel",),   # batch tiles shard across TCs on v7x
        ),
    )(ht2d, wsel)


def reference(ht, W):
    s = jnp.sum(ht.astype(jnp.float32) * W[None, :, :].astype(jnp.float32), axis=2)
    return jax.nn.softmax(s, axis=1)


if __name__ == "__main__":
    batch, lag, n_hidden_1 = 2, 8, 32

    key = jax.random.PRNGKey(0)
    k_ht, k_w = jax.random.split(key)

    # deterministic xavier-normal init for W: std = sqrt(2 / (fan_in + fan_out))
    std = (2.0 / (lag + n_hidden_1)) ** 0.5
    W = std * jax.random.normal(k_w, (lag, n_hidden_1), dtype=jnp.float32)
    ht = jax.random.normal(k_ht, (batch, lag, n_hidden_1), dtype=jnp.float32)

    ref = reference(ht, W)

    # f32 input path — matches the PyTorch module to tight tolerance.
    att = jax.block_until_ready(time_att(ht, W))
    assert att.shape == (batch, lag)
    assert jnp.allclose(att, ref, atol=1e-5, rtol=1e-5)
    assert jnp.allclose(jnp.sum(att, axis=1), jnp.ones((batch,)), atol=1e-5)

    # bf16 input path — halves HBM traffic on this bandwidth-bound kernel
    # (f32 accumulation + f32 softmax); looser tolerance for input rounding,
    # sum-to-1 is still exact since the softmax normalizes in f32.
    att_bf16 = jax.block_until_ready(time_att(ht.astype(jnp.bfloat16), W))
    assert jnp.allclose(att_bf16, ref, atol=2e-2, rtol=2e-2)
    assert jnp.allclose(jnp.sum(att_bf16, axis=1), jnp.ones((batch,)), atol=1e-4)

    print("KERNEL_OK")
</pallas_src>

<mosaic_0001>
module attributes {stable_mosaic.version = 11 : i64} {
  func.func @_time_att_kernel(%arg0: i32, %arg1: memref<2x256xf32, #tpu.memory_space<vmem>>, %arg2: memref<256x8xf32, #tpu.memory_space<vmem>>, %arg3: memref<2x8xf32, #tpu.memory_space<vmem>>) attributes {dimension_semantics = [#tpu.dimension_semantics<parallel>], iteration_bounds = array<i64: 1>, scalar_prefetch = 0 : i64, scratch_operands = 0 : i64, tpu.core_type = #tpu.core_type<tc>, window_params = [{transform_indices = @transform_0, window_bounds = array<i64: 2, 256>}, {pipeline_mode = #tpu.pipeline_mode<synchronous>, transform_indices = @transform_1, window_bounds = array<i64: 256, 8>}, {transform_indices = @transform_2, window_bounds = array<i64: 2, 8>}]} {
    %c0 = arith.constant 0 : index
    %c0_0 = arith.constant 0 : index
    %0 = vector.load %arg1[%c0, %c0_0] : memref<2x256xf32, #tpu.memory_space<vmem>>, vector<2x256xf32>
    %c0_1 = arith.constant 0 : index
    %c0_2 = arith.constant 0 : index
    %1 = vector.load %arg2[%c0_1, %c0_2] : memref<256x8xf32, #tpu.memory_space<vmem>>, vector<256x8xf32>
    %cst = arith.constant dense<0.000000e+00> : vector<2x8xf32>
    %2 = tpu.matmul %0, %1, %cst {dimension_numbers = #tpu.dot_dimension_numbers<[1], [0], [0], [1], [0, 0, 1, 1], [], []>} : vector<2x256xf32>, vector<256x8xf32>, vector<2x8xf32> -> vector<2x8xf32>
    %cst_3 = arith.constant dense<0xFF800000> : vector<2xf32>
    %3 = vector.multi_reduction <maximumf>, %2, %cst_3 [1] : vector<2x8xf32> to vector<2xf32>
    %4 = vector.shape_cast %3 : vector<2xf32> to vector<2x1xf32>
    %5 = vector.broadcast %4 : vector<2x1xf32> to vector<2x8xf32>
    %6 = arith.subf %2, %5 : vector<2x8xf32>
    %7 = math.exp %6 : vector<2x8xf32>
    %cst_4 = arith.constant dense<0.000000e+00> : vector<2xf32>
    %8 = vector.multi_reduction <add>, %7, %cst_4 [1] : vector<2x8xf32> to vector<2xf32>
    %9 = vector.shape_cast %8 : vector<2xf32> to vector<2x1xf32>
    %10 = tpu.reciprocal %9 : vector<2x1xf32> -> vector<2x1xf32>
    %11 = vector.broadcast %10 : vector<2x1xf32> to vector<2x8xf32>
    %12 = arith.mulf %7, %11 : vector<2x8xf32>
    %c0_5 = arith.constant 0 : index
    %c0_6 = arith.constant 0 : index
    %13 = vector.load %arg3[%c0_5, %c0_6] : memref<2x8xf32, #tpu.memory_space<vmem>>, vector<2x8xf32>
    tpu.vector_store %arg3[%c0_5, %c0_6], %12 {strides = array<i32>} : memref<2x8xf32, #tpu.memory_space<vmem>>, vector<2x8xf32>,
    return
  }
  func.func @transform_0(%arg0: i32) -> (i32, i32) {
    %c0_i32 = arith.constant 0 : i32
    %c0_i32_0 = arith.constant 0 : i32
    return %arg0, %c0_i32 : i32, i32
  }
  func.func @transform_1(%arg0: i32) -> (i32, i32) {
    %c0_i32 = arith.constant 0 : i32
    %c0_i32_0 = arith.constant 0 : i32
    %c0_i32_1 = arith.constant 0 : i32
    return %c0_i32, %c0_i32_0 : i32, i32
  }
  func.func @transform_2(%arg0: i32) -> (i32, i32) {
    %c0_i32 = arith.constant 0 : i32
    %c0_i32_0 = arith.constant 0 : i32
    return %arg0, %c0_i32 : i32, i32
  }
}

</mosaic_0001>

<llo_original>
// kernel: tpu_custom_call.1
$region0: #{tpu_custom_call.1}
  #allocation0 [shape = 'u32[]', space=smem, size = 0x4, offset = 0x4, fixed_abs, tag = 'smem constant byte address 0x4 - core index']
  #allocation1 [shape = 'u32[144,128]{1,0:T(1,128)}', space=vmem, size = 0x12000, scoped, tag = 'internal scratch']
  %s0 = inlined_call_operand.vmem [shape: f32[2,256], index: 0, kind: input, shape index: {}]
  %s1 = inlined_call_operand.vmem [shape: f32[256,8], index: 1, kind: input, shape index: {}]
  %s2 = inlined_call_operand.hbm [shape: f32[2,8], index: 2, kind: output, shape index: {}]
  %s3 = sld [smem:[#allocation0]]
  $region18: #{tpu_custom_call.1} parent=0
    _
  %s5 = ssub.s32 1, %s3
  %s6 = scalar_select 0, %s5, %s3
  $region1: #{tpu_custom_call.1} parent=0
    #allocation2 [shape = 'u8[1024]{0}', space=vmem, size = 0x400, scoped, tag = 'output window, operand 0, single buffered']
    #allocation3 [shape = 's32[1]{0}', space=sflag, size = 0x4, scoped, tag = 'scoped memory for tpu_custom_call.1']
    %7 = vsyncpa [#allocation3], 0
    // Predicated region
    $region2: #{tpu_custom_call.1} parent=1 // pred_check
      _
    $region3: #{tpu_custom_call.1} parent=1 // pred_check_branch
      %9 = sbr.rel (0) target = $region5
    $region4: #{tpu_custom_call.1} parent=1 // pred_region
      _
    $region5: #{tpu_custom_call.1} parent=1 // pred_fallthru
      _
    // Predicated region
    $region6: #{tpu_custom_call.1} parent=1 // pred_check
      _
    $region7: #{tpu_custom_call.1} parent=1 // pred_check_branch
      %11 = sbr.rel (0) target = $region9
    $region8: #{tpu_custom_call.1} parent=1 // pred_region
      _
    $region9: #{tpu_custom_call.1} parent=1 // pred_fallthru
      _
    %v12 = vld [vmem:[%s0] sm:$0xf]
    %v13 = vld [vmem:[%s1] sm:$0xff]
    %v14 = vld [vmem:[%s1 + $0x8] sm:$0xff]
    %v15 = vld [vmem:[%s1 + $0x10] sm:$0xff]
    %v16 = vld [vmem:[%s1 + $0x18] sm:$0xff]
    %v17 = vld [vmem:[%s1 + $0x20] sm:$0xff]
    %v18 = vld [vmem:[%s1 + $0x28] sm:$0xff]
    %v19 = vld [vmem:[%s1 + $0x30] sm:$0xff]
    %v20 = vld [vmem:[%s1 + $0x38] sm:$0xff]
    %v21 = vld [vmem:[%s1 + $0x40] sm:$0xff]
    %v22 = vld [vmem:[%s1 + $0x48] sm:$0xff]
    %v23 = vld [vmem:[%s1 + $0x50] sm:$0xff]
    %v24 = vld [vmem:[%s1 + $0x58] sm:$0xff]
    %v25 = vld [vmem:[%s1 + $0x60] sm:$0xff]
    %v26 = vld [vmem:[%s1 + $0x68] sm:$0xff]
    %v27 = vld [vmem:[%s1 + $0x70] sm:$0xff]
    %v28 = vld [vmem:[%s1 + $0x78] sm:$0xff]
    %v29 = vld [vmem:[%s1 + $0x80] sm:$0xff]
    %v30 = vld [vmem:[%s1 + $0x88] sm:$0xff]
    %v31 = vld [vmem:[%s1 + $0x90] sm:$0xff]
    %v32 = vld [vmem:[%s1 + $0x98] sm:$0xff]
    %v33 = vld [vmem:[%s1 + $0xa0] sm:$0xff]
    %v34 = vld [vmem:[%s1 + $0xa8] sm:$0xff]
    %v35 = vld [vmem:[%s1 + $0xb0] sm:$0xff]
    %v36 = vld [vmem:[%s1 + $0xb8] sm:$0xff]
    %v37 = vld [vmem:[%s1 + $0xc0] sm:$0xff]
    %v38 = vld [vmem:[%s1 + $0xc8] sm:$0xff]
    %v39 = vld [vmem:[%s1 + $0xd0] sm:$0xff]
    %v40 = vld [vmem:[%s1 + $0xd8] sm:$0xff]
    %v41 = vld [vmem:[%s1 + $0xe0] sm:$0xff]
    %v42 = vld [vmem:[%s1 + $0xe8] sm:$0xff]
    %v43 = vld [vmem:[%s1 + $0xf0] sm:$0xff]
    %v44 = vld [vmem:[%s1 + $0xf8] sm:$0xff]
    %v47 = vunpack.c.l.s4 1983009808
    %v48 = vunpack.c.0.s8 %v47
    %v49 = vlaneseq
    %v50 = vshrl.u32 %v49, 7
    %v51 = vsub.s32 %v48, %v50
    %v52 = vrot.slane %v12, %v51
    %v53 = vcombine.high %v52, %v52
    %56 = vmatprep.subr.mxu0 0.0
    %57 = vmatpush1.msra.mxu0 %v13
    %58 = vmatprep.subr.mxu0 0.0
    %59 = vmatpush1.msra.mxu0 %v14
    %60 = vmatprep.subr.mxu0 0.0
    %61 = vmatpush1.msra.mxu0 %v15
    %62 = vmatprep.subr.mxu0 0.0
    %63 = vmatpush1.msra.mxu0 %v16
    %64 = vmatprep.subr.mxu0 0.0
    %65 = vmatpush1.msra.mxu0 %v17
    %66 = vmatprep.subr.mxu0 0.0
    %67 = vmatpush1.msra.mxu0 %v18
    %68 = vmatprep.subr.mxu0 0.0
    %69 = vmatpush1.msra.mxu0 %v19
    %70 = vmatprep.subr.mxu0 0.0
    %71 = vmatpush1.msra.mxu0 %v20
    %72 = vmatprep.subr.mxu0 0.0
    %73 = vmatpush1.msra.mxu0 %v21
    %74 = vmatprep.subr.mxu0 0.0
    %75 = vmatpush1.msra.mxu0 %v22
    %76 = vmatprep.subr.mxu0 0.0
    %77 = vmatpush1.msra.mxu0 %v23
    %78 = vmatprep.subr.mxu0 0.0
    %79 = vmatpush1.msra.mxu0 %v24
    %80 = vmatprep.subr.mxu0 0.0
    %81 = vmatpush1.msra.mxu0 %v25
    %82 = vmatprep.subr.mxu0 0.0
    %83 = vmatpush1.msra.mxu0 %v26
    %84 = vmatprep.subr.mxu0 0.0
    %85 = vmatpush1.msra.mxu0 %v27
    %86 = vmatprep.subr.mxu0 0.0
    %87 = vmatpush1.msra.mxu0 %v28
    %88 = vmatprep.subr.mxu0 0.0
    %89 = vmatpush1.msra.mxu0 %v29
    %90 = vmatprep.subr.mxu0 0.0
    %91 = vmatpush1.msra.mxu0 %v30
    %92 = vmatprep.subr.mxu0 0.0
    %93 = vmatpush1.msra.mxu0 %v31
    %94 = vmatprep.subr.mxu0 0.0
    %95 = vmatpush1.msra.mxu0 %v32
    %96 = vmatprep.subr.mxu0 0.0
    %97 = vmatpush1.msra.mxu0 %v33
    %98 = vmatprep.subr.mxu0 0.0
    %99 = vmatpush1.msra.mxu0 %v34
    %100 = vmatprep.subr.mxu0 0.0
    %101 = vmatpush1.msra.mxu0 %v35
    %102 = vmatprep.subr.mxu0 0.0
    %103 = vmatpush1.msra.mxu0 %v36
    %104 = vmatprep.subr.mxu0 0.0
    %105 = vmatpush1.msra.mxu0 %v37
    %106 = vmatprep.subr.mxu0 0.0
    %107 = vmatpush1.msra.mxu0 %v38
    %108 = vmatprep.subr.mxu0 0.0
    %109 = vmatpush1.msra.mxu0 %v39
    %110 = vmatprep.subr.mxu0 0.0
    %111 = vmatpush1.msra.mxu0 %v40
    %112 = vmatprep.subr.mxu0 0.0
    %113 = vmatpush1.msra.mxu0 %v41
    %114 = vmatprep.subr.mxu0 0.0
    %115 = vmatpush1.msra.mxu0 %v42
    %116 = vmatprep.subr.mxu0 0.0
    %117 = vmatpush1.msra.mxu0 %v43
    %118 = vmatprep.subr.mxu0 0.0
    %119 = vmatpush1.msra.mxu0 %v44
    %120 = vmatprep.mubr.f32.mxu0 %v53
    %121 = vmatmul.mubr.f32.gmra.mrb[0].mxu0 %v52
    %v122 = vpop.f32.mrb[0].mxu0
    %v123 = vadd.f32 0.0, %v122
    %v124 = vpop.f32.mrb[0].mxu0
    %125 = vdwg.mxu0
    %vm126 = vcmask 58368
    %v127 = vsel %vm126, %v123, -inf
    %128 = vmax.xlane.f32.xlu0 %v127
    %v129 = vpop.xlane.xlu0 %128
    %v130 = vsub.f32 %v123, %v129
    %v131 = vmul.f32 %v130, 1.442695
    %v132 = vpow.pop %v131
    %v133 = vsel %vm126, %v132, 0.0
    %134 = vadd.xlane.f32.xlu0 %v133
    %v135 = vpop.xlane.xlu0 %134
    %v136 = vrcp.pop %v135
    %v137 = vmul.f32 %v132, %v136
    %138 = vst.msk [vmem:[#allocation2] sm:$0x3] %vm126, %v137
    // Predicated region
    $region10: #{tpu_custom_call.1} parent=1 // pred_check
      _
    $region11: #{tpu_custom_call.1} parent=1 // pred_check_branch
      %140 = sbr.rel (0) target = $region13
    $region12: #{tpu_custom_call.1} parent=1 // pred_region
      %s142 = ssub.s32 32, 32
      %143 = vsyncadd [#allocation3], %s142
      %s145 = sshll.u32 [#allocation2], 4
      %s146 = int_to_ptr.vmem [resolvable:$true] %s145
      %148 = dma.vmem_to_hbm [thread:$0]  %s146, 32, %s2, [#allocation3]
    $region13: #{tpu_custom_call.1} parent=1 // pred_fallthru
      _
    // Predicated region
    $region14: #{tpu_custom_call.1} parent=1 // pred_check
      _
    $region15: #{tpu_custom_call.1} parent=1 // pred_check_branch
      %150 = sbr.rel (0) target = $region17
    $region16: #{tpu_custom_call.1} parent=1 // pred_region
      %151 = dma.done [#allocation3], 32
    $region17: #{tpu_custom_call.1} parent=1 // pred_fallthru
      _
    %152 = vsyncpa [#allocation3], 1

</llo_original>
